<compile_context>
chip_gen: v7x
topology: tpu7x:2x2x1
jax: 0.10.0
libtpu: 0.0.40
codegen_flags: <defaults>
</compile_context>

<pallas_src>
import functools

import jax
import jax.numpy as jnp
from jax.experimental import pallas as pl
from jax.experimental.pallas import tpu as pltpu


def _round_up(x, m):
    return ((x + m - 1) // m) * m


# ---------------------------------------------------------------------------
# Pallas kernel: for a row tile of destination nodes, accumulate
#   acc = (A + I)[tile, :] @ (d_src^-1/2 * X)        over the K grid axis,
# then finalize
#   O = (d_dst^-1/2 * acc) @ [W1 || W2] + [b1 || b2]   (bf16 lane-dense store).
# ---------------------------------------------------------------------------
def gcn_fused_kernel(adj_ref, x_ref, dinv_ref, w_ref, b_ref, o_ref, acc_ref,
                     *, tile_k):
    k = pl.program_id(1)

    @pl.when(k == 0)
    def _():
        acc_ref[...] = jnp.zeros_like(acc_ref)

    # Resident X: slice the current K window (start is a multiple of tile_k,
    # itself a multiple of 128).
    start = pl.multiple_of(k * tile_k, 128)
    xk = x_ref[pl.ds(start, tile_k), :]                      # (tile_k, c_in) bf16

    # int8 counts -> bf16 is exact for small integers; bf16 x bf16 -> f32 acc.
    adj = adj_ref[...].astype(jnp.bfloat16)                  # (tile_n, tile_k)
    acc_ref[...] += jnp.dot(adj, xk, preferred_element_type=jnp.float32)

    @pl.when(k == pl.num_programs(1) - 1)
    def _():
        # Destination-degree scaling in f32, then the cheap fused tail matmul
        # (runs once per row tile) in bf16, single lane-dense bf16 store.
        ax = acc_ref[...] * dinv_ref[...]                    # (tile_n, c_in) f32
        o_ref[...] = (jnp.dot(ax.astype(jnp.bfloat16), w_ref[...],
                              preferred_element_type=jnp.float32)
                      + b_ref[...]).astype(o_ref.dtype)


def cmap_encoder_forward(x, edge_index, params, *, tile_n=None, tile_k=None):
    N, c_in = x.shape
    c_out = params["w1"].shape[1]

    # ---- fuse the two heads into one lane-dense (mult. of 128) slab --------
    c2 = 2 * c_out
    c_pad = _round_up(c2, 128)
    w = (jnp.zeros((c_in, c_pad), jnp.float32)
         .at[:, :c_out].set(params["w1"])
         .at[:, c_out:c2].set(params["w2"])).astype(jnp.bfloat16)
    b = (jnp.zeros((1, c_pad), jnp.float32)
         .at[0, :c_out].set(params["b1"])
         .at[0, c_out:c2].set(params["b2"]))

    # ---- tile sizes ---------------------------------------------------------
    # Rows: large tiles, but keep >= 2 row tiles when N allows (v7x megacore).
    # int8 adjacency => row tile multiple of 32, column tile multiple of 128.
    if tile_n is None:
        half = _round_up(max(-(-N // 2), 1), 32)
        tile_n = min(512, half)
    if tile_k is None:
        tile_k = min(2048, _round_up(N, 128))
    assert tile_n % 32 == 0 and tile_k % 128 == 0

    n_rows = _round_up(N, tile_n)
    n_cols = _round_up(N, tile_k)

    # ---- build padded (A + I) integer counts directly at (n_rows, n_cols) ---
    # (matches torch_geometric gcn_norm with add_remaining_self_loops,
    #  edge_weight = 1; A[target, source])
    src = edge_index[0]
    dst = edge_index[1]
    counts = jnp.zeros((n_rows, n_cols), jnp.int32).at[dst, src].add(1)
    idx = jnp.arange(N)
    diag = counts[idx, idx]
    counts = counts.at[idx, idx].set(jnp.where(diag > 0, diag, 1))
    deg = counts.sum(axis=1).astype(jnp.float32)             # padded rows -> 0
    d_inv_sqrt = jnp.where(deg > 0, 1.0 / jnp.sqrt(deg), 0.0)  # (n_rows,)
    adj_i8 = counts.astype(jnp.int8)                         # exact small ints

    # Pre-scale X by the source-degree factor, stream in bf16, keep resident.
    x_p = jnp.zeros((n_cols, c_in), jnp.bfloat16).at[:N].set(
        (x * d_inv_sqrt[:N, None]).astype(jnp.bfloat16))
    dinv = d_inv_sqrt.reshape(n_rows, 1)                     # destination scale

    grid = (n_rows // tile_n, n_cols // tile_k)

    out = pl.pallas_call(
        functools.partial(gcn_fused_kernel, tile_k=tile_k),
        out_shape=jax.ShapeDtypeStruct((n_rows, c_pad), jnp.bfloat16),
        grid_spec=pltpu.PrefetchScalarGridSpec(
            num_scalar_prefetch=0,
            grid=grid,
            in_specs=[
                pl.BlockSpec((tile_n, tile_k), lambda i, k: (i, k)),  # (A+I) i8
                pl.BlockSpec((n_cols, c_in), lambda i, k: (0, 0)),    # X resident
                pl.BlockSpec((tile_n, 1), lambda i, k: (i, 0)),       # d_dst^-1/2
                pl.BlockSpec((c_in, c_pad), lambda i, k: (0, 0)),     # W1||W2
                pl.BlockSpec((1, c_pad), lambda i, k: (0, 0)),        # b1||b2
            ],
            out_specs=pl.BlockSpec((tile_n, c_pad), lambda i, k: (i, 0)),
            scratch_shapes=[pltpu.VMEM((tile_n, c_in), jnp.float32)],
        ),
        compiler_params=pltpu.CompilerParams(
            dimension_semantics=("parallel", "arbitrary"),
            vmem_limit_bytes=48 * 1024 * 1024),
    )(adj_i8, x_p, dinv, w, b)

    mu = out[:N, :c_out].astype(jnp.float32)
    logstd = out[:N, c_out:c2].astype(jnp.float32)
    return mu, logstd


# ---------------------------------------------------------------------------
# Pure-JAX f32 reference (PyTorch GCNConv order), for validation.
# ---------------------------------------------------------------------------
def _gcn_norm_dense_f32(edge_index, num_nodes):
    src = edge_index[0]
    dst = edge_index[1]
    a = jnp.zeros((num_nodes, num_nodes), jnp.float32).at[dst, src].add(1.0)
    idx = jnp.arange(num_nodes)
    diag = a[idx, idx]
    a = a.at[idx, idx].set(jnp.where(diag > 0, diag, 1.0))
    deg = a.sum(axis=1)
    dis = jnp.where(deg > 0, 1.0 / jnp.sqrt(deg), 0.0)
    return dis[:, None] * a * dis[None, :]


def cmap_encoder_ref(x, edge_index, params):
    adj = _gcn_norm_dense_f32(edge_index, x.shape[0])
    o1 = adj @ (x @ params["w1"]) + params["b1"][None, :]
    o2 = adj @ (x @ params["w2"]) + params["b2"][None, :]
    return o1, o2


def init_params(key, c_in, c_out):
    k1, k2, k3, k4 = jax.random.split(key, 4)
    scale = 1.0 / jnp.sqrt(jnp.float32(c_in))
    return {
        "w1": jax.random.normal(k1, (c_in, c_out), jnp.float32) * scale,
        "b1": jax.random.normal(k2, (c_out,), jnp.float32) * 0.01,
        "w2": jax.random.normal(k3, (c_in, c_out), jnp.float32) * scale,
        "b2": jax.random.normal(k4, (c_out,), jnp.float32) * 0.01,
    }


if __name__ == "__main__":
    key = jax.random.PRNGKey(0)
    k_x, k_e, k_p = jax.random.split(key, 3)

    num_nodes = 8          # small graph
    in_channels = 16
    out_channels = 32      # small stand-in for the module's 200
    num_edges = 20

    x = jax.random.normal(k_x, (num_nodes, in_channels), jnp.float32)
    edge_index = jax.random.randint(
        k_e, (2, num_edges), 0, num_nodes, dtype=jnp.int32)
    params = init_params(k_p, in_channels, out_channels)

    mu, logstd = cmap_encoder_forward(x, edge_index, params)
    jax.block_until_ready((mu, logstd))

    # bf16 is used for X / weights / output (f32 accumulation, exact integer
    # adjacency + f32 degree scales), so compare with loose-but-safe tolerance.
    mu_ref, logstd_ref = cmap_encoder_ref(x, edge_index, params)
    assert jnp.allclose(mu, mu_ref, atol=5e-2, rtol=5e-2)
    assert jnp.allclose(logstd, logstd_ref, atol=5e-2, rtol=5e-2)

    # TODO(synk): true sparse scatter-add aggregation (edge_index message
    # passing) has no clean dense-BlockSpec equivalent at large N; the GCN
    # aggregation is realized as a dense (A+I) int8 matmul with factorized
    # D^-1/2 scaling.
    print("KERNEL_OK")
</pallas_src>

<mosaic_0001>
module attributes {stable_mosaic.version = 11 : i64} {
  func.func @gcn_fused_kernel(%arg0: i32, %arg1: i32, %arg2: memref<32x128xi8, #tpu.memory_space<vmem>>, %arg3: memref<128x16xbf16, #tpu.memory_space<vmem>>, %arg4: memref<32x1xf32, #tpu.memory_space<vmem>>, %arg5: memref<16x128xbf16, #tpu.memory_space<vmem>>, %arg6: memref<1x128xf32, #tpu.memory_space<vmem>>, %arg7: memref<32x128xbf16, #tpu.memory_space<vmem>>, %arg8: memref<32x16xf32, #tpu.memory_space<vmem>>) attributes {dimension_semantics = [#tpu.dimension_semantics<parallel>, #tpu.dimension_semantics<arbitrary>], iteration_bounds = array<i64: 1, 1>, scalar_prefetch = 0 : i64, scratch_operands = 1 : i64, tpu.core_type = #tpu.core_type<tc>, window_params = [{transform_indices = @transform_0, window_bounds = array<i64: 32, 128>}, {pipeline_mode = #tpu.pipeline_mode<synchronous>, transform_indices = @transform_1, window_bounds = array<i64: 128, 16>}, {transform_indices = @transform_2, window_bounds = array<i64: 32, 1>}, {pipeline_mode = #tpu.pipeline_mode<synchronous>, transform_indices = @transform_3, window_bounds = array<i64: 16, 128>}, {pipeline_mode = #tpu.pipeline_mode<synchronous>, transform_indices = @transform_4, window_bounds = array<i64: 1, 128>}, {transform_indices = @transform_5, window_bounds = array<i64: 32, 128>}]} {
    %c0_i32 = arith.constant 0 : i32
    %0 = arith.cmpi eq, %arg1, %c0_i32 : i32
    %1 = arith.extui %0 : i1 to i32
    %c0_i32_0 = arith.constant 0 : i32
    %2 = arith.cmpi ne, %1, %c0_i32_0 : i32
    scf.if %2 {
      %cst_9 = arith.constant 0.000000e+00 : f32
      %16 = vector.broadcast %cst_9 : f32 to vector<32x16xf32>
      %c0_10 = arith.constant 0 : index
      %c0_11 = arith.constant 0 : index
      %17 = vector.load %arg8[%c0_10, %c0_11] : memref<32x16xf32, #tpu.memory_space<vmem>>, vector<32x16xf32>
      tpu.vector_store %arg8[%c0_10, %c0_11], %16 {strides = array<i32>} : memref<32x16xf32, #tpu.memory_space<vmem>>, vector<32x16xf32>,
    } else {
    }
    %c128_i32 = arith.constant 128 : i32
    %3 = arith.muli %arg1, %c128_i32 : i32
    %4 = tpu.assume_multiple %3, 128 : i32
    %5 = arith.index_cast %4 : i32 to index
    %c0 = arith.constant 0 : index
    %6 = vector.load %arg3[%5, %c0] : memref<128x16xbf16, #tpu.memory_space<vmem>>, vector<128x16xbf16>
    %c0_1 = arith.constant 0 : index
    %c0_2 = arith.constant 0 : index
    %7 = vector.load %arg2[%c0_1, %c0_2] : memref<32x128xi8, #tpu.memory_space<vmem>>, vector<32x128xi8>
    %8 = arith.sitofp %7 : vector<32x128xi8> to vector<32x128xbf16>
    %c0_3 = arith.constant 0 : index
    %c0_4 = arith.constant 0 : index
    %9 = vector.load %arg8[%c0_3, %c0_4] : memref<32x16xf32, #tpu.memory_space<vmem>>, vector<32x16xf32>
    %cst = arith.constant dense<0.000000e+00> : vector<32x16xf32>
    %10 = tpu.matmul %8, %6, %cst {dimension_numbers = #tpu.dot_dimension_numbers<[1], [0], [0], [1], [0, 0, 1, 1], [], []>} : vector<32x128xbf16>, vector<128x16xbf16>, vector<32x16xf32> -> vector<32x16xf32>
    %11 = arith.addf %9, %10 : vector<32x16xf32>
    %c0_5 = arith.constant 0 : index
    %c0_6 = arith.constant 0 : index
    %12 = vector.load %arg8[%c0_5, %c0_6] : memref<32x16xf32, #tpu.memory_space<vmem>>, vector<32x16xf32>
    tpu.vector_store %arg8[%c0_5, %c0_6], %11 {strides = array<i32>} : memref<32x16xf32, #tpu.memory_space<vmem>>, vector<32x16xf32>,
    %c0_i32_7 = arith.constant 0 : i32
    %13 = arith.cmpi eq, %arg1, %c0_i32_7 : i32
    %14 = arith.extui %13 : i1 to i32
    %c0_i32_8 = arith.constant 0 : i32
    %15 = arith.cmpi ne, %14, %c0_i32_8 : i32
    scf.if %15 {
      %c0_9 = arith.constant 0 : index
      %c0_10 = arith.constant 0 : index
      %16 = vector.load %arg8[%c0_9, %c0_10] : memref<32x16xf32, #tpu.memory_space<vmem>>, vector<32x16xf32>
      %c0_11 = arith.constant 0 : index
      %c0_12 = arith.constant 0 : index
      %17 = vector.load %arg4[%c0_11, %c0_12] : memref<32x1xf32, #tpu.memory_space<vmem>>, vector<32x1xf32>
      %18 = vector.broadcast %17 : vector<32x1xf32> to vector<32x16xf32>
      %19 = arith.mulf %16, %18 : vector<32x16xf32>
      %20 = arith.truncf %19 : vector<32x16xf32> to vector<32x16xbf16>
      %c0_13 = arith.constant 0 : index
      %c0_14 = arith.constant 0 : index
      %21 = vector.load %arg5[%c0_13, %c0_14] : memref<16x128xbf16, #tpu.memory_space<vmem>>, vector<16x128xbf16>
      %cst_15 = arith.constant dense<0.000000e+00> : vector<32x128xf32>
      %22 = tpu.matmul %20, %21, %cst_15 {dimension_numbers = #tpu.dot_dimension_numbers<[1], [0], [0], [1], [0, 0, 1, 1], [], []>} : vector<32x16xbf16>, vector<16x128xbf16>, vector<32x128xf32> -> vector<32x128xf32>
      %c0_16 = arith.constant 0 : index
      %c0_17 = arith.constant 0 : index
      %23 = vector.load %arg6[%c0_16, %c0_17] : memref<1x128xf32, #tpu.memory_space<vmem>>, vector<1x128xf32>
      %24 = vector.broadcast %23 : vector<1x128xf32> to vector<32x128xf32>
      %25 = arith.addf %22, %24 : vector<32x128xf32>
      %26 = arith.truncf %25 : vector<32x128xf32> to vector<32x128xbf16>
      %c0_18 = arith.constant 0 : index
      %c0_19 = arith.constant 0 : index
      %27 = vector.load %arg7[%c0_18, %c0_19] : memref<32x128xbf16, #tpu.memory_space<vmem>>, vector<32x128xbf16>
      tpu.vector_store %arg7[%c0_18, %c0_19], %26 {strides = array<i32>} : memref<32x128xbf16, #tpu.memory_space<vmem>>, vector<32x128xbf16>,
    } else {
    }
    return
  }
  func.func @transform_0(%arg0: i32, %arg1: i32) -> (i32, i32) {
    %c0_i32 = arith.constant 0 : i32
    return %arg0, %arg1 : i32, i32
  }
  func.func @transform_1(%arg0: i32, %arg1: i32) -> (i32, i32) {
    %c0_i32 = arith.constant 0 : i32
    %c0_i32_0 = arith.constant 0 : i32
    %c0_i32_1 = arith.constant 0 : i32
    return %c0_i32, %c0_i32_0 : i32, i32
  }
  func.func @transform_2(%arg0: i32, %arg1: i32) -> (i32, i32) {
    %c0_i32 = arith.constant 0 : i32
    %c0_i32_0 = arith.constant 0 : i32
    return %arg0, %c0_i32 : i32, i32
  }
  func.func @transform_3(%arg0: i32, %arg1: i32) -> (i32, i32) {
    %c0_i32 = arith.constant 0 : i32
    %c0_i32_0 = arith.constant 0 : i32
    %c0_i32_1 = arith.constant 0 : i32
    return %c0_i32, %c0_i32_0 : i32, i32
  }
  func.func @transform_4(%arg0: i32, %arg1: i32) -> (i32, i32) {
    %c0_i32 = arith.constant 0 : i32
    %c0_i32_0 = arith.constant 0 : i32
    %c0_i32_1 = arith.constant 0 : i32
    return %c0_i32, %c0_i32_0 : i32, i32
  }
  func.func @transform_5(%arg0: i32, %arg1: i32) -> (i32, i32) {
    %c0_i32 = arith.constant 0 : i32
    %c0_i32_0 = arith.constant 0 : i32
    return %arg0, %c0_i32 : i32, i32
  }
}

</mosaic_0001>

<llo_original>
// kernel: tpu_custom_call.1
$region0: #{tpu_custom_call.1}
  #allocation0 [shape = 'u32[]', space=smem, size = 0x4, offset = 0x4, fixed_abs, tag = 'smem constant byte address 0x4 - core index']
  #allocation1 [shape = 'u32[144,128]{1,0:T(1,128)}', space=vmem, size = 0x12000, scoped, tag = 'internal scratch']
  #allocation2 [shape = 'f32[32,16]{1,0:T(8,128)}', space=vmem, size = 0x4000, scoped, tag = 'scratch operand']
  %s0 = inlined_call_operand.vmem [shape: s8[32,128], index: 0, kind: input, shape index: {}]
  %s1 = inlined_call_operand.vmem [shape: bf16[128,16], index: 1, kind: input, shape index: {}]
  %s2 = inlined_call_operand.vmem [shape: f32[32,1], index: 2, kind: input, shape index: {}]
  %s3 = inlined_call_operand.vmem [shape: bf16[16,128], index: 3, kind: input, shape index: {}]
  %s4 = inlined_call_operand.vmem [shape: f32[1,128], index: 4, kind: input, shape index: {}]
  %s5 = inlined_call_operand.hbm [shape: bf16[32,128], index: 5, kind: output, shape index: {}]
  %s6 = sld [smem:[#allocation0]]
  $region38: #{tpu_custom_call.1} parent=0
    _
  %s8 = ssub.s32 1, %s6
  %s9 = scalar_select 0, %s8, %s6
  $region1: #{tpu_custom_call.1} parent=0
    #allocation3 [shape = 'u8[8192]{0}', space=vmem, size = 0x2000, scoped, tag = 'output window, operand 0, single buffered']
    #allocation4 [shape = 's32[1]{0}', space=sflag, size = 0x4, scoped, tag = 'scoped memory for tpu_custom_call.1']
    %10 = vsyncpa [#allocation4], 0
    // Predicated region
    $region2: #{tpu_custom_call.1} parent=1 // pred_check
      _
    $region3: #{tpu_custom_call.1} parent=1 // pred_check_branch
      %12 = sbr.rel (0) target = $region5
    $region4: #{tpu_custom_call.1} parent=1 // pred_region
      _
    $region5: #{tpu_custom_call.1} parent=1 // pred_fallthru
      _
    // Predicated region
    $region6: #{tpu_custom_call.1} parent=1 // pred_check
      _
    $region7: #{tpu_custom_call.1} parent=1 // pred_check_branch
      %14 = sbr.rel (0) target = $region9
    $region8: #{tpu_custom_call.1} parent=1 // pred_region
      _
    $region9: #{tpu_custom_call.1} parent=1 // pred_fallthru
      _
    // Predicated region
    $region10: #{tpu_custom_call.1} parent=1 // pred_check
      _
    $region11: #{tpu_custom_call.1} parent=1 // pred_check_branch
      %16 = sbr.rel (0) target = $region13
    $region12: #{tpu_custom_call.1} parent=1 // pred_region
      _
    $region13: #{tpu_custom_call.1} parent=1 // pred_fallthru
      _
    // Predicated region
    $region14: #{tpu_custom_call.1} parent=1 // pred_check
      _
    $region15: #{tpu_custom_call.1} parent=1 // pred_check_branch
      %18 = sbr.rel (0) target = $region17
    $region16: #{tpu_custom_call.1} parent=1 // pred_region
      _
    $region17: #{tpu_custom_call.1} parent=1 // pred_fallthru
      _
    // Predicated region
    $region18: #{tpu_custom_call.1} parent=1 // pred_check
      _
    $region19: #{tpu_custom_call.1} parent=1 // pred_check_branch
      %20 = sbr.rel (0) target = $region21
    $region20: #{tpu_custom_call.1} parent=1 // pred_region
      _
    $region21: #{tpu_custom_call.1} parent=1 // pred_fallthru
      _
    %p22 = scmp.eq.s32.totalorder 0, 0
    // Predicated region
    $region22: #{tpu_custom_call.1} parent=1 // pred_check
      %p23 = pneg %p22
    $region23: #{tpu_custom_call.1} parent=1 // pred_check_branch
      %25 = sbr.rel (%p23) target = $region25
    $region24: #{tpu_custom_call.1} parent=1 // pred_region
      %vm26 = vcmask 130048
      %27 = vst.msk [vmem:[#allocation2] sm:$0xff] %vm26, 0.0
      %28 = vst.msk [vmem:[#allocation2 + $0x8] sm:$0xff] %vm26, 0.0
      %29 = vst.msk [vmem:[#allocation2 + $0x10] sm:$0xff] %vm26, 0.0
      %30 = vst.msk [vmem:[#allocation2 + $0x18] sm:$0xff] %vm26, 0.0
    $region25: #{tpu_custom_call.1} parent=1 // pred_fallthru
      _
    %s31 = smul.u32 0, 128
    %s32 = sshra.s32 %s31, 3
    %s33 = sand.u32 %s31, 7
    %s34 = smul.addr %s32, 4
    %s35 = scalar_lea.vmem %s1, %s34
    %v36 = vld [vmem:[%s35] sm:$0xf]
    %v37 = vld [vmem:[%s35 + $0x4] sm:$0xf]
    %v38 = vld [vmem:[%s35 + $0x8] sm:$0xf]
    %v39 = vld [vmem:[%s35 + $0xc] sm:$0xf]
    %v40 = vld [vmem:[%s35 + $0x10] sm:$0xf]
    %v41 = vld [vmem:[%s35 + $0x14] sm:$0xf]
    %v42 = vld [vmem:[%s35 + $0x18] sm:$0xf]
    %v43 = vld [vmem:[%s35 + $0x1c] sm:$0xf]
    %v44 = vld [vmem:[%s35 + $0x20] sm:$0xf]
    %v45 = vld [vmem:[%s35 + $0x24] sm:$0xf]
    %v46 = vld [vmem:[%s35 + $0x28] sm:$0xf]
    %v47 = vld [vmem:[%s35 + $0x2c] sm:$0xf]
    %v48 = vld [vmem:[%s35 + $0x30] sm:$0xf]
    %v49 = vld [vmem:[%s35 + $0x34] sm:$0xf]
    %v50 = vld [vmem:[%s35 + $0x38] sm:$0xf]
    %v51 = vld [vmem:[%s35 + $0x3c] sm:$0xf]
    %v52 = vld [vmem:[%s0] sm:$0xff]
    %v53 = vunpack.c.l.s8.bf16 %v52
    %v54 = vunpack.c.h.s8.bf16 %v52
    %v55 = vld [vmem:[#allocation2] sm:$0xff]
    %v56 = vld [vmem:[#allocation2 + $0x8] sm:$0xff]
    %v57 = vld [vmem:[#allocation2 + $0x10] sm:$0xff]
    %v58 = vld [vmem:[#allocation2 + $0x18] sm:$0xff]
    %v75 = vunpack.c.l.b16 %v36
    %v76 = vunpack.c.l.b16 %v37
    %v77 = vunpack.c.l.b16 %v38
    %v78 = vunpack.c.l.b16 %v39
    %v79 = vunpack.c.l.b16 %v40
    %v80 = vunpack.c.l.b16 %v41
    %v81 = vunpack.c.l.b16 %v42
    %v82 = vunpack.c.l.b16 %v43
    %v83 = vunpack.c.l.b16 %v44
    %v84 = vunpack.c.l.b16 %v45
    %v85 = vunpack.c.l.b16 %v46
    %v86 = vunpack.c.l.b16 %v47
    %v87 = vunpack.c.l.b16 %v48
    %v88 = vunpack.c.l.b16 %v49
    %v89 = vunpack.c.l.b16 %v50
    %v90 = vunpack.c.l.b16 %v51
    %v91 = vpack.c.b16 %v76, %v75
    %v92 = vpack.c.b16 %v78, %v77
    %v93 = vpack.c.b16 %v80, %v79
    %v94 = vpack.c.b16 %v82, %v81
    %v95 = vpack.c.b16 %v84, %v83
    %v96 = vpack.c.b16 %v86, %v85
    %v97 = vpack.c.b16 %v88, %v87
    %v98 = vpack.c.b16 %v90, %v89
    %107 = vmatprep.subr.bf16.mxu0 0
    %108 = vmatpush1.bf16.msra.mxu0 %v91
    %109 = vmatprep.subr.bf16.mxu0 0
    %110 = vmatpush1.bf16.msra.mxu0 %v92
    %111 = vmatprep.subr.bf16.mxu0 0
    %112 = vmatpush1.bf16.msra.mxu0 %v93
    %113 = vmatprep.subr.bf16.mxu0 0
    %114 = vmatpush1.bf16.msra.mxu0 %v94
    %115 = vmatprep.subr.bf16.mxu0 0
    %116 = vmatpush1.bf16.msra.mxu0 %v95
    %117 = vmatprep.subr.bf16.mxu0 0
    %118 = vmatpush1.bf16.msra.mxu0 %v96
    %119 = vmatprep.subr.bf16.mxu0 0
    %120 = vmatpush1.bf16.msra.mxu0 %v97
    %121 = vmatprep.subr.bf16.mxu0 0
    %122 = vmatpush1.bf16.msra.mxu0 %v98
    %123 = vmatprep.subr.bf16.mxu0 0
    %124 = vmatpush1.bf16.msra.mxu0 0
    %125 = vmatprep.subr.bf16.mxu0 0
    %126 = vmatpush1.bf16.msra.mxu0 0
    %127 = vmatprep.subr.bf16.mxu0 0
    %128 = vmatpush1.bf16.msra.mxu0 0
    %129 = vmatprep.subr.bf16.mxu0 0
    %130 = vmatpush1.bf16.msra.mxu0 0
    %131 = vmatprep.subr.bf16.mxu0 0
    %132 = vmatpush1.bf16.msra.mxu0 0
    %133 = vmatprep.subr.bf16.mxu0 0
    %134 = vmatpush1.bf16.msra.mxu0 0
    %135 = vmatprep.subr.bf16.mxu0 0
    %136 = vmatpush1.bf16.msra.mxu0 0
    %137 = vmatprep.subr.bf16.mxu0 0
    %138 = vmatpush1.bf16.msra.mxu0 0
    %139 = vmatprep.mubr.bf16.mxu0 0
    %140 = vmatmul.mubr.bf16.gmra.mrb[0].mxu0 %v53
    %v141 = vpop.f32.mrb[0].mxu0
    %v142 = vadd.f32 0.0, %v141
    %v143 = vpop.f32.mrb[0].mxu0
    %v144 = vpop.f32.mrb[0].mxu0
    %v145 = vadd.f32 0.0, %v144
    %v146 = vpop.f32.mrb[0].mxu0
    %147 = vmatprep.mubr.bf16.mxu0 0
    %148 = vmatmul.mubr.bf16.gmra.mrb[0].mxu0 %v54
    %v149 = vpop.f32.mrb[0].mxu0
    %v150 = vadd.f32 0.0, %v149
    %v151 = vpop.f32.mrb[0].mxu0
    %v152 = vpop.f32.mrb[0].mxu0
    %v153 = vadd.f32 0.0, %v152
    %v154 = vpop.f32.mrb[0].mxu0
    %155 = vdwg.mxu0
    %v156 = vadd.f32 %v55, %v142
    %v157 = vadd.f32 %v56, %v145
    %v158 = vadd.f32 %v57, %v150
    %v159 = vadd.f32 %v58, %v153
    %vm160 = vcmask 130048
    %161 = vst.msk [vmem:[#allocation2] sm:$0xff] %vm160, %v156
    %162 = vst.msk [vmem:[#allocation2 + $0x8] sm:$0xff] %vm160, %v157
    %163 = vst.msk [vmem:[#allocation2 + $0x10] sm:$0xff] %vm160, %v158
    %164 = vst.msk [vmem:[#allocation2 + $0x18] sm:$0xff] %vm160, %v159
    // Predicated region
    $region26: #{tpu_custom_call.1} parent=1 // pred_check
      %p165 = pneg %p22
    $region27: #{tpu_custom_call.1} parent=1 // pred_check_branch
      %167 = sbr.rel (%p165) target = $region29
    $region28: #{tpu_custom_call.1} parent=1 // pred_region
      %v168 = vld [vmem:[#allocation2] sm:$0xff]
      %v169 = vld [vmem:[#allocation2 + $0x8] sm:$0xff]
      %v170 = vld [vmem:[#allocation2 + $0x10] sm:$0xff]
      %v171 = vld [vmem:[#allocation2 + $0x18] sm:$0xff]
      %v172 = vld [vmem:[%s2] sm:$0xff]
      %v173 = vld [vmem:[%s2 + $0x8] sm:$0xff]
      %v174 = vld [vmem:[%s2 + $0x10] sm:$0xff]
      %v175 = vld [vmem:[%s2 + $0x18] sm:$0xff]
      %177 = vset.pattern.permute.xlu0 0
      %178 = vperm.xlu0 %177, %v172
      %v179 = vpop.permute.xlu0 %178
      %182 = vset.pattern.permute.xlu0 0
      %183 = vperm.xlu0 %182, %v173
      %v184 = vpop.permute.xlu0 %183
      %187 = vset.pattern.permute.xlu0 0
      %188 = vperm.xlu0 %187, %v174
      %v189 = vpop.permute.xlu0 %188
      %192 = vset.pattern.permute.xlu0 0
      %193 = vperm.xlu0 %192, %v175
      %v194 = vpop.permute.xlu0 %193
      %v196 = vmul.f32 %v168, %v179
      %v197 = vmul.f32 %v169, %v184
      %v198 = vmul.f32 %v170, %v189
      %v199 = vmul.f32 %v171, %v194
      %v200 = vpack.c.bf16 %v197, %v196
      %v201 = vpack.c.bf16 %v199, %v198
      %v202 = vld [vmem:[%s3] sm:$0xf]
      %v203 = vld [vmem:[%s3 + $0x4] sm:$0xf]
      %v204 = vld [vmem:[%s4] sm:$0x1]
      %v206 = vlaneseq
      %v207 = vshrl.u32 %v206, 7
      %v208 = vsub.s32 0, %v207
      %v209 = vrot.slane %v204, %v208
      %v213 = vunpack.c.l.b16 %v202
      %v214 = vunpack.c.l.b16 %v203
      %v215 = vpack.c.b16 %v214, %v213
      %v218 = vsel %vm160, %v200, 0
      %v221 = vsel %vm160, %v201, 0
      %223 = vmatprep.subr.bf16.mxu0 0
      %224 = vmatpush1.bf16.msra.mxu0 %v215
      %225 = vmatprep.subr.bf16.mxu0 0
      %226 = vmatpush1.bf16.msra.mxu0 0
      %227 = vmatprep.subr.bf16.mxu0 0
      %228 = vmatpush1.bf16.msra.mxu0 0
      %229 = vmatprep.subr.bf16.mxu0 0
      %230 = vmatpush1.bf16.msra.mxu0 0
      %231 = vmatprep.subr.bf16.mxu0 0
      %232 = vmatpush1.bf16.msra.mxu0 0
      %233 = vmatprep.subr.bf16.mxu0 0
      %234 = vmatpush1.bf16.msra.mxu0 0
      %235 = vmatprep.subr.bf16.mxu0 0
      %236 = vmatpush1.bf16.msra.mxu0 0
      %237 = vmatprep.subr.bf16.mxu0 0
      %238 = vmatpush1.bf16.msra.mxu0 0
      %239 = vmatprep.subr.bf16.mxu0 0
      %240 = vmatpush1.bf16.msra.mxu0 0
      %241 = vmatprep.subr.bf16.mxu0 0
      %242 = vmatpush1.bf16.msra.mxu0 0
      %243 = vmatprep.subr.bf16.mxu0 0
      %244 = vmatpush1.bf16.msra.mxu0 0
      %245 = vmatprep.subr.bf16.mxu0 0
      %246 = vmatpush1.bf16.msra.mxu0 0
      %247 = vmatprep.subr.bf16.mxu0 0
      %248 = vmatpush1.bf16.msra.mxu0 0
      %249 = vmatprep.subr.bf16.mxu0 0
      %250 = vmatpush1.bf16.msra.mxu0 0
      %251 = vmatprep.subr.bf16.mxu0 0
      %252 = vmatpush1.bf16.msra.mxu0 0
      %253 = vmatprep.subr.bf16.mxu0 0
      %254 = vmatpush1.bf16.msra.mxu0 0
      %255 = vmatprep.mubr.bf16.mxu0 0
      %256 = vmatmul.mubr.bf16.gmra.mrb[0].mxu0 %v218
      %v257 = vpop.f32.mrb[0].mxu0
      %v258 = vadd.f32 %v209, %v257
      %v259 = vpop.f32.mrb[0].mxu0
      %v260 = vpop.f32.mrb[0].mxu0
      %v261 = vadd.f32 %v209, %v260
      %v262 = vpop.f32.mrb[0].mxu0
      %263 = vmatprep.mubr.bf16.mxu0 0
      %264 = vmatmul.mubr.bf16.gmra.mrb[0].mxu0 %v221
      %v265 = vpop.f32.mrb[0].mxu0
      %v266 = vadd.f32 %v209, %v265
      %v267 = vpop.f32.mrb[0].mxu0
      %v268 = vpop.f32.mrb[0].mxu0
      %v269 = vadd.f32 %v209, %v268
      %v270 = vpop.f32.mrb[0].mxu0
      %271 = vdwg.mxu0
      %v272 = vpack.c.bf16 %v261, %v258
      %v273 = vpack.c.bf16 %v269, %v266
      %v276 = vunpack.c.l.b16 %v272
      %v277 = vunpack.c.h.b16 %v272
      %v278 = vunpack.c.l.b16 %v273
      %v279 = vunpack.c.h.b16 %v273
      %v280 = vpack.c.b16 %v276, %v276
      %v281 = vpack.c.b16 %v277, %v277
      %v282 = vpack.c.b16 %v278, %v278
      %v283 = vpack.c.b16 %v279, %v279
      %288 = vst [vmem:[#allocation3] sm:$0xf] %v280
      %289 = vst [vmem:[#allocation3 + $0x4] sm:$0xf] %v281
      %290 = vst [vmem:[#allocation3 + $0x8] sm:$0xf] %v282
      %291 = vst [vmem:[#allocation3 + $0xc] sm:$0xf] %v283
    $region29: #{tpu_custom_call.1} parent=1 // pred_fallthru
      _
    // Predicated region
    $region30: #{tpu_custom_call.1} parent=1 // pred_check
      _
    $region31: #{tpu_custom_call.1} parent=1 // pred_check_branch
      %293 = sbr.rel (0) target = $region33
    $region32: #{tpu_custom_call.1} parent=1 // pred_region
      %s295 = ssub.s32 256, 256
      %296 = vsyncadd [#allocation4], %s295
      %s297 = sshll.u32 [#allocation3], 4
      %s298 = int_to_ptr.vmem [resolvable:$true] %s297
      %303 = dma.vmem_to_hbm [thread:$0]  %s298, 256, %s5, [#allocation4], 64, 64, 4
    $region33: #{tpu_custom_call.1} parent=1 // pred_fallthru
      _
    // Predicated region
    $region34: #{tpu_custom_call.1} parent=1 // pred_check
      _
    $region35: #{tpu_custom_call.1} parent=1 // pred_check_branch
      %305 = sbr.rel (0) target = $region37
    $region36: #{tpu_custom_call.1} parent=1 // pred_region
      %306 = dma.done [#allocation4], 256
    $region37: #{tpu_custom_call.1} parent=1 // pred_fallthru
      _
    %307 = vsyncpa [#allocation4], 1

</llo_original>
